<compile_context>
chip_gen: v5e
topology: v5e:2x2
jax: 0.10.0
libtpu: 0.0.40
codegen_flags: <defaults>
</compile_context>

<pallas_src>
import jax
import jax.numpy as jnp
from jax import lax
from jax.experimental import pallas as pl
from jax.experimental.pallas import tpu as pltpu  # noqa: F401  (TPU backend)

# ----------------------------- config (small) -------------------------------
VOCAB = 50          # config.vocab_size
ASPECT_VOCAB = 10   # config.aspect_vocab_size
E = 32              # config.embedding_dim (== GRU hidden size)
H = E
L = 3               # config.label_num
T = 8               # sequence length
B = 4               # batch size
TBL_ROWS = 128      # 2*VOCAB = 100 padded up to a lane-dense 128-deep contraction


# ------------------------- single fused Pallas kernel ------------------------
def bigru_aspect_kernel(text_ref, aspect_ref, table_ref, wh_ref, bhn_ref,
                        aemb_ref, w1_ref, b1_ref, g_ref, be_ref,
                        w2_ref, b2_ref, out_ref):
    TB = T * B                                            # 32

    # ---- fused gather + input projection (+ folded biases): ONE matmul -------
    # table_ref (128, 3H) bf16:
    #   row v        = emb[v] @ W_ih_fwd^T + b_ih_fwd + [b_hr, b_hz, 0]_fwd
    #   row VOCAB+v  = emb[v] @ W_ih_bwd^T + b_ih_bwd + [b_hr, b_hz, 0]_bwd
    #   rows 2V..127 = 0 (padding)
    idx = text_ref[...]                                   # (TB, 1) int32, natural time order
    idx2 = jnp.concatenate([idx, idx + VOCAB], axis=0)    # (2TB,1): rows 0:TB fwd, TB:2TB bwd
    lane = lax.broadcasted_iota(jnp.int32, (2 * TB, TBL_ROWS), 1)
    onehot = (idx2 == lane).astype(jnp.float32).astype(jnp.bfloat16)   # exact 0/1 in bf16
    gi_all = jnp.dot(onehot, table_ref[...],
                     preferred_element_type=jnp.float32)  # (2TB, 3H) f32

    wh = wh_ref[...]                                      # (2H, 3H) bf16, loop-invariant RHS
    bhn = bhn_ref[...]                                    # (2B, H)  f32, pre-broadcast b_hn

    # block-diagonal direction mask for the padded hidden layout [hf|0 ; 0|hb]
    r_i = lax.broadcasted_iota(jnp.int32, (2 * B, 2 * H), 0)
    c_i = lax.broadcasted_iota(jnp.int32, (2 * B, 2 * H), 1)
    rf = (r_i < B).astype(jnp.float32)
    cf = (c_i < H).astype(jnp.float32)
    dir_mask = rf * cf + (1.0 - rf) * (1.0 - cf)          # f32 (2B, 2H)

    def sigmoid(x):
        # one EUP transcendental instead of exp + reciprocal on the serial chain
        return 0.5 * jnp.tanh(0.5 * x) + 0.5

    def gi_at(s):
        # fwd half in natural time, bwd half read at reversed time offsets.
        # Independent of h -> off the serial recurrence chain (scheduler hoists).
        gf = gi_all[s * B:(s + 1) * B, :]
        gb = gi_all[TB + (T - 1 - s) * B: TB + (T - s) * B, :]
        return jnp.concatenate([gf, gb], axis=0)          # (2B, 3H)

    # ---- step 0 peeled: h == 0 -> W_h h == 0 (b_hr / b_hz already folded) ----
    gi = gi_at(0)
    r = sigmoid(gi[:, :H])
    z = sigmoid(gi[:, H:2 * H])
    n = jnp.tanh(gi[:, 2 * H:] + r * bhn)
    h_c = (1.0 - z) * n                                   # compact (2B, H) f32 state

    # ---- steps 1..T-1, fully unrolled; one fused (2B,2H)@(2H,3H) per step -----
    # wh is loaded once before the loop; Mosaic keeps the loop-invariant RHS
    # push hoisted so each step only pays the array drain, not the weight load.
    for s in range(1, T):
        h_pad = (jnp.concatenate([h_c, h_c], axis=1) * dir_mask).astype(jnp.bfloat16)
        gh = jnp.dot(h_pad, wh, preferred_element_type=jnp.float32)     # (2B, 3H)
        gi = gi_at(s)
        r = sigmoid(gi[:, :H] + gh[:, :H])
        z = sigmoid(gi[:, H:2 * H] + gh[:, H:2 * H])
        n = jnp.tanh(gi[:, 2 * H:] + r * (gh[:, 2 * H:] + bhn))
        h_c = (1.0 - z) * n + z * h_c

    # last_hidden == h_n.permute(1,0,2).reshape(B,-1) == [h_fwd_final | h_bwd_final]
    last_hidden = jnp.concatenate([h_c[:B, :], h_c[B:, :]], axis=1)     # (B, 2H)

    # ---- head: fc1 -> BatchNorm1d (batch stats) -> +aspect -> ReLU -> fc2 ----
    y = jnp.dot(last_hidden, w1_ref[...],
                preferred_element_type=jnp.float32) + b1_ref[...]       # (B, E)
    mean = jnp.mean(y, axis=0, keepdims=True)
    var = jnp.mean((y - mean) ** 2, axis=0, keepdims=True)
    y = (y - mean) * lax.rsqrt(var + 1e-5)
    y = y * g_ref[...] + be_ref[...]

    a_onehot = (aspect_ref[...] ==
                lax.broadcasted_iota(jnp.int32, (B, ASPECT_VOCAB), 1)
                ).astype(jnp.float32)                                   # (B, AV)
    y = y + jnp.dot(a_onehot, aemb_ref[...],
                    preferred_element_type=jnp.float32)                 # + aspect embed
    y = jnp.maximum(y, 0.0)                                             # ReLU
    out_ref[...] = jnp.dot(y, w2_ref[...],
                           preferred_element_type=jnp.float32) + b2_ref[...]


# ------------------------------ full forward ---------------------------------
def bigru_aspect_forward(text, target, aspect, params):
    del target  # unused in the reference forward
    # Only free bitcast-reshapes here (no flip / offset / concat wrapper glue).
    idx = text.reshape(T * B, 1).astype(jnp.int32)        # (T*B, 1), natural time order
    asp = aspect.reshape(B, 1).astype(jnp.int32)          # (B, 1)

    return pl.pallas_call(
        bigru_aspect_kernel,
        out_shape=jax.ShapeDtypeStruct((B, L), jnp.float32),
    )(idx, asp,
      params["table"], params["wh"], params["bhn"],
      params["aspect_embedding"],
      params["w1"], params["b1"], params["bn_g"], params["bn_b"],
      params["w2"], params["b2"])


# ------------------------- deterministic parameter init ----------------------
def init_params(key):
    ks = jax.random.split(key, 16)
    s_gru = 1.0 / jnp.sqrt(E)
    s_fc1 = 1.0 / jnp.sqrt(2 * E)
    s_fc2 = 1.0 / jnp.sqrt(E)

    def u(k, shape, s):
        return jax.random.uniform(k, shape, jnp.float32, -s, s)

    emb = jax.random.normal(ks[0], (VOCAB, E), jnp.float32)
    aemb = jax.random.normal(ks[1], (ASPECT_VOCAB, E), jnp.float32)

    # GRU weights stored transposed (in_dim, 3H), gate order [r, z, n].
    wi_f, wi_b = u(ks[2], (E, 3 * H), s_gru), u(ks[6], (E, 3 * H), s_gru)
    wh_f, wh_b = u(ks[3], (H, 3 * H), s_gru), u(ks[7], (H, 3 * H), s_gru)
    bi_f, bi_b = u(ks[4], (1, 3 * H), s_gru), u(ks[8], (1, 3 * H), s_gru)
    bh_f, bh_b = u(ks[5], (1, 3 * H), s_gru), u(ks[9], (1, 3 * H), s_gru)

    # Fold embedding gather + input projection + all h-independent biases into
    # one (128, 3H) table.  Each one-hot row selects exactly one table row, so
    # adding (b_ih + [b_hr, b_hz, 0]) to every row == adding it after the matmul.
    rz_only = jnp.concatenate([jnp.ones((1, 2 * H), jnp.float32),
                               jnp.zeros((1, H), jnp.float32)], axis=1)
    table = jnp.zeros((TBL_ROWS, 3 * H), jnp.float32)
    table = table.at[:VOCAB].set(emb @ wi_f + bi_f + bh_f * rz_only)
    table = table.at[VOCAB:2 * VOCAB].set(emb @ wi_b + bi_b + bh_b * rz_only)

    # b_hn (the only bias that must stay inside the recurrence), pre-broadcast
    # to the fused (2B, H) gate-row layout (rows 0:B fwd, B:2B bwd).
    bhn = jnp.concatenate([jnp.broadcast_to(bh_f[:, 2 * H:], (B, H)),
                           jnp.broadcast_to(bh_b[:, 2 * H:], (B, H))], axis=0)

    return {
        "table": table.astype(jnp.bfloat16),                              # (128, 3H)
        "wh": jnp.concatenate([wh_f, wh_b], axis=0).astype(jnp.bfloat16),  # (2H, 3H)
        "bhn": bhn,                                                       # (2B, H) f32
        "aspect_embedding": aemb,                                         # (AV, E)
        "w1": u(ks[10], (2 * E, E), s_fc1), "b1": u(ks[11], (1, E), s_fc1),
        "bn_g": jnp.ones((1, E), jnp.float32), "bn_b": jnp.zeros((1, E), jnp.float32),
        "w2": u(ks[12], (E, L), s_fc2), "b2": u(ks[13], (1, L), s_fc2),
    }


if __name__ == "__main__":
    key = jax.random.PRNGKey(0)
    k_p, k_t, k_a, k_tg = jax.random.split(key, 4)
    params = init_params(k_p)

    text = jax.random.randint(k_t, (T, B), 0, VOCAB, dtype=jnp.int32)
    aspect = jax.random.randint(k_a, (B,), 0, ASPECT_VOCAB, dtype=jnp.int32)
    target = jax.random.randint(k_tg, (B,), 0, VOCAB, dtype=jnp.int32)  # unused

    logits = jax.jit(bigru_aspect_forward)(text, target, aspect, params)
    jax.block_until_ready(logits)
    assert logits.shape == (B, L)
    print("KERNEL_OK")
</pallas_src>

<mosaic_0001>
module attributes {stable_mosaic.version = 11 : i64} {
  func.func @bigru_aspect_kernel(%arg0: memref<32x1xi32, #tpu.memory_space<vmem>>, %arg1: memref<4x1xi32, #tpu.memory_space<vmem>>, %arg2: memref<128x96xbf16, #tpu.memory_space<vmem>>, %arg3: memref<64x96xbf16, #tpu.memory_space<vmem>>, %arg4: memref<8x32xf32, #tpu.memory_space<vmem>>, %arg5: memref<10x32xf32, #tpu.memory_space<vmem>>, %arg6: memref<64x32xf32, #tpu.memory_space<vmem>>, %arg7: memref<1x32xf32, #tpu.memory_space<vmem>>, %arg8: memref<1x32xf32, #tpu.memory_space<vmem>>, %arg9: memref<1x32xf32, #tpu.memory_space<vmem>>, %arg10: memref<32x3xf32, #tpu.memory_space<vmem>>, %arg11: memref<1x3xf32, #tpu.memory_space<vmem>>, %arg12: memref<4x3xf32, #tpu.memory_space<vmem>>) attributes {dimension_semantics = [], scalar_prefetch = 0 : i64, scratch_operands = 0 : i64, tpu.core_type = #tpu.core_type<tc>} {
    %c0 = arith.constant 0 : index
    %c0_0 = arith.constant 0 : index
    %0 = vector.load %arg0[%c0, %c0_0] : memref<32x1xi32, #tpu.memory_space<vmem>>, vector<32x1xi32>
    %c50_i32 = arith.constant 50 : i32
    %1 = vector.broadcast %c50_i32 : i32 to vector<32x1xi32>
    %2 = arith.addi %0, %1 : vector<32x1xi32>
    %3 = tpu.concatenate %0, %2 in 0 : vector<32x1xi32>, vector<32x1xi32> -> vector<64x1xi32>
    %4 = tpu.iota {dimensions = array<i32: 1>} : vector<64x128xi32>
    %5 = vector.broadcast %3 : vector<64x1xi32> to vector<64x128xi32>
    %6 = arith.cmpi eq, %5, %4 : vector<64x128xi32>
    %7 = arith.extui %6 : vector<64x128xi1> to vector<64x128xi32>
    %8 = arith.sitofp %7 : vector<64x128xi32> to vector<64x128xf32>
    %9 = arith.truncf %8 : vector<64x128xf32> to vector<64x128xbf16>
    %c0_1 = arith.constant 0 : index
    %c0_2 = arith.constant 0 : index
    %10 = vector.load %arg2[%c0_1, %c0_2] : memref<128x96xbf16, #tpu.memory_space<vmem>>, vector<128x96xbf16>
    %cst = arith.constant dense<0.000000e+00> : vector<64x96xf32>
    %11 = tpu.matmul %9, %10, %cst {dimension_numbers = #tpu.dot_dimension_numbers<[1], [0], [0], [1], [0, 0, 1, 1], [], []>} : vector<64x128xbf16>, vector<128x96xbf16>, vector<64x96xf32> -> vector<64x96xf32>
    %c0_3 = arith.constant 0 : index
    %c0_4 = arith.constant 0 : index
    %12 = vector.load %arg3[%c0_3, %c0_4] : memref<64x96xbf16, #tpu.memory_space<vmem>>, vector<64x96xbf16>
    %c0_5 = arith.constant 0 : index
    %c0_6 = arith.constant 0 : index
    %13 = vector.load %arg4[%c0_5, %c0_6] : memref<8x32xf32, #tpu.memory_space<vmem>>, vector<8x32xf32>
    %14 = tpu.iota {dimensions = array<i32: 0>} : vector<8x64xi32>
    %15 = tpu.iota {dimensions = array<i32: 1>} : vector<8x64xi32>
    %c4_i32 = arith.constant 4 : i32
    %16 = vector.broadcast %c4_i32 : i32 to vector<8x64xi32>
    %17 = arith.cmpi slt, %14, %16 : vector<8x64xi32>
    %18 = arith.extui %17 : vector<8x64xi1> to vector<8x64xi32>
    %19 = arith.sitofp %18 : vector<8x64xi32> to vector<8x64xf32>
    %c32_i32 = arith.constant 32 : i32
    %20 = vector.broadcast %c32_i32 : i32 to vector<8x64xi32>
    %21 = arith.cmpi slt, %15, %20 : vector<8x64xi32>
    %22 = arith.extui %21 : vector<8x64xi1> to vector<8x64xi32>
    %23 = arith.sitofp %22 : vector<8x64xi32> to vector<8x64xf32>
    %24 = arith.mulf %19, %23 : vector<8x64xf32>
    %cst_7 = arith.constant 1.000000e+00 : f32
    %25 = vector.broadcast %cst_7 : f32 to vector<8x64xf32>
    %26 = arith.subf %25, %19 : vector<8x64xf32>
    %cst_8 = arith.constant 1.000000e+00 : f32
    %27 = vector.broadcast %cst_8 : f32 to vector<8x64xf32>
    %28 = arith.subf %27, %23 : vector<8x64xf32>
    %29 = arith.mulf %26, %28 : vector<8x64xf32>
    %30 = arith.addf %24, %29 : vector<8x64xf32>
    %31 = vector.extract_strided_slice %11 {offsets = [0, 0], sizes = [4, 96], strides = [1, 1]} : vector<64x96xf32> to vector<4x96xf32>
    %32 = vector.extract_strided_slice %11 {offsets = [60, 0], sizes = [4, 96], strides = [1, 1]} : vector<64x96xf32> to vector<4x96xf32>
    %33 = tpu.concatenate %31, %32 in 0 : vector<4x96xf32>, vector<4x96xf32> -> vector<8x96xf32>
    %34 = vector.extract_strided_slice %33 {offsets = [0, 0], sizes = [8, 32], strides = [1, 1]} : vector<8x96xf32> to vector<8x32xf32>
    %cst_9 = arith.constant 5.000000e-01 : f32
    %35 = vector.broadcast %cst_9 : f32 to vector<8x32xf32>
    %36 = arith.mulf %35, %34 : vector<8x32xf32>
    %37 = math.tanh %36 : vector<8x32xf32>
    %cst_10 = arith.constant 5.000000e-01 : f32
    %38 = vector.broadcast %cst_10 : f32 to vector<8x32xf32>
    %39 = arith.mulf %38, %37 : vector<8x32xf32>
    %cst_11 = arith.constant 5.000000e-01 : f32
    %40 = vector.broadcast %cst_11 : f32 to vector<8x32xf32>
    %41 = arith.addf %39, %40 : vector<8x32xf32>
    %42 = vector.extract_strided_slice %33 {offsets = [0, 32], sizes = [8, 32], strides = [1, 1]} : vector<8x96xf32> to vector<8x32xf32>
    %cst_12 = arith.constant 5.000000e-01 : f32
    %43 = vector.broadcast %cst_12 : f32 to vector<8x32xf32>
    %44 = arith.mulf %43, %42 : vector<8x32xf32>
    %45 = math.tanh %44 : vector<8x32xf32>
    %cst_13 = arith.constant 5.000000e-01 : f32
    %46 = vector.broadcast %cst_13 : f32 to vector<8x32xf32>
    %47 = arith.mulf %46, %45 : vector<8x32xf32>
    %cst_14 = arith.constant 5.000000e-01 : f32
    %48 = vector.broadcast %cst_14 : f32 to vector<8x32xf32>
    %49 = arith.addf %47, %48 : vector<8x32xf32>
    %50 = vector.extract_strided_slice %33 {offsets = [0, 64], sizes = [8, 32], strides = [1, 1]} : vector<8x96xf32> to vector<8x32xf32>
    %51 = arith.mulf %41, %13 : vector<8x32xf32>
    %52 = arith.addf %50, %51 : vector<8x32xf32>
    %53 = math.tanh %52 : vector<8x32xf32>
    %cst_15 = arith.constant 1.000000e+00 : f32
    %54 = vector.broadcast %cst_15 : f32 to vector<8x32xf32>
    %55 = arith.subf %54, %49 : vector<8x32xf32>
    %56 = arith.mulf %55, %53 : vector<8x32xf32>
    %57 = tpu.concatenate %56, %56 in 1 : vector<8x32xf32>, vector<8x32xf32> -> vector<8x64xf32>
    %58 = arith.mulf %57, %30 : vector<8x64xf32>
    %59 = arith.truncf %58 : vector<8x64xf32> to vector<8x64xbf16>
    %cst_16 = arith.constant dense<0.000000e+00> : vector<8x96xf32>
    %60 = tpu.matmul %59, %12, %cst_16 {dimension_numbers = #tpu.dot_dimension_numbers<[1], [0], [0], [1], [0, 0, 1, 1], [], []>} : vector<8x64xbf16>, vector<64x96xbf16>, vector<8x96xf32> -> vector<8x96xf32>
    %61 = vector.extract_strided_slice %11 {offsets = [4, 0], sizes = [4, 96], strides = [1, 1]} : vector<64x96xf32> to vector<4x96xf32>
    %62 = vector.extract_strided_slice %11 {offsets = [56, 0], sizes = [4, 96], strides = [1, 1]} : vector<64x96xf32> to vector<4x96xf32>
    %63 = tpu.concatenate %61, %62 in 0 : vector<4x96xf32>, vector<4x96xf32> -> vector<8x96xf32>
    %64 = vector.extract_strided_slice %63 {offsets = [0, 0], sizes = [8, 32], strides = [1, 1]} : vector<8x96xf32> to vector<8x32xf32>
    %65 = vector.extract_strided_slice %60 {offsets = [0, 0], sizes = [8, 32], strides = [1, 1]} : vector<8x96xf32> to vector<8x32xf32>
    %66 = arith.addf %64, %65 : vector<8x32xf32>
    %cst_17 = arith.constant 5.000000e-01 : f32
    %67 = vector.broadcast %cst_17 : f32 to vector<8x32xf32>
    %68 = arith.mulf %67, %66 : vector<8x32xf32>
    %69 = math.tanh %68 : vector<8x32xf32>
    %cst_18 = arith.constant 5.000000e-01 : f32
    %70 = vector.broadcast %cst_18 : f32 to vector<8x32xf32>
    %71 = arith.mulf %70, %69 : vector<8x32xf32>
    %cst_19 = arith.constant 5.000000e-01 : f32
    %72 = vector.broadcast %cst_19 : f32 to vector<8x32xf32>
    %73 = arith.addf %71, %72 : vector<8x32xf32>
    %74 = vector.extract_strided_slice %63 {offsets = [0, 32], sizes = [8, 32], strides = [1, 1]} : vector<8x96xf32> to vector<8x32xf32>
    %75 = vector.extract_strided_slice %60 {offsets = [0, 32], sizes = [8, 32], strides = [1, 1]} : vector<8x96xf32> to vector<8x32xf32>
    %76 = arith.addf %74, %75 : vector<8x32xf32>
    %cst_20 = arith.constant 5.000000e-01 : f32
    %77 = vector.broadcast %cst_20 : f32 to vector<8x32xf32>
    %78 = arith.mulf %77, %76 : vector<8x32xf32>
    %79 = math.tanh %78 : vector<8x32xf32>
    %cst_21 = arith.constant 5.000000e-01 : f32
    %80 = vector.broadcast %cst_21 : f32 to vector<8x32xf32>
    %81 = arith.mulf %80, %79 : vector<8x32xf32>
    %cst_22 = arith.constant 5.000000e-01 : f32
    %82 = vector.broadcast %cst_22 : f32 to vector<8x32xf32>
    %83 = arith.addf %81, %82 : vector<8x32xf32>
    %84 = vector.extract_strided_slice %63 {offsets = [0, 64], sizes = [8, 32], strides = [1, 1]} : vector<8x96xf32> to vector<8x32xf32>
    %85 = vector.extract_strided_slice %60 {offsets = [0, 64], sizes = [8, 32], strides = [1, 1]} : vector<8x96xf32> to vector<8x32xf32>
    %86 = arith.addf %85, %13 : vector<8x32xf32>
    %87 = arith.mulf %73, %86 : vector<8x32xf32>
    %88 = arith.addf %84, %87 : vector<8x32xf32>
    %89 = math.tanh %88 : vector<8x32xf32>
    %cst_23 = arith.constant 1.000000e+00 : f32
    %90 = vector.broadcast %cst_23 : f32 to vector<8x32xf32>
    %91 = arith.subf %90, %83 : vector<8x32xf32>
    %92 = arith.mulf %91, %89 : vector<8x32xf32>
    %93 = arith.mulf %83, %56 : vector<8x32xf32>
    %94 = arith.addf %92, %93 : vector<8x32xf32>
    %95 = tpu.concatenate %94, %94 in 1 : vector<8x32xf32>, vector<8x32xf32> -> vector<8x64xf32>
    %96 = arith.mulf %95, %30 : vector<8x64xf32>
    %97 = arith.truncf %96 : vector<8x64xf32> to vector<8x64xbf16>
    %cst_24 = arith.constant dense<0.000000e+00> : vector<8x96xf32>
    %98 = tpu.matmul %97, %12, %cst_24 {dimension_numbers = #tpu.dot_dimension_numbers<[1], [0], [0], [1], [0, 0, 1, 1], [], []>} : vector<8x64xbf16>, vector<64x96xbf16>, vector<8x96xf32> -> vector<8x96xf32>
    %99 = vector.extract_strided_slice %11 {offsets = [8, 0], sizes = [4, 96], strides = [1, 1]} : vector<64x96xf32> to vector<4x96xf32>
    %100 = vector.extract_strided_slice %11 {offsets = [52, 0], sizes = [4, 96], strides = [1, 1]} : vector<64x96xf32> to vector<4x96xf32>
    %101 = tpu.concatenate %99, %100 in 0 : vector<4x96xf32>, vector<4x96xf32> -> vector<8x96xf32>
    %102 = vector.extract_strided_slice %101 {offsets = [0, 0], sizes = [8, 32], strides = [1, 1]} : vector<8x96xf32> to vector<8x32xf32>
    %103 = vector.extract_strided_slice %98 {offsets = [0, 0], sizes = [8, 32], strides = [1, 1]} : vector<8x96xf32> to vector<8x32xf32>
    %104 = arith.addf %102, %103 : vector<8x32xf32>
    %cst_25 = arith.constant 5.000000e-01 : f32
    %105 = vector.broadcast %cst_25 : f32 to vector<8x32xf32>
    %106 = arith.mulf %105, %104 : vector<8x32xf32>
    %107 = math.tanh %106 : vector<8x32xf32>
    %cst_26 = arith.constant 5.000000e-01 : f32
    %108 = vector.broadcast %cst_26 : f32 to vector<8x32xf32>
    %109 = arith.mulf %108, %107 : vector<8x32xf32>
    %cst_27 = arith.constant 5.000000e-01 : f32
    %110 = vector.broadcast %cst_27 : f32 to vector<8x32xf32>
    %111 = arith.addf %109, %110 : vector<8x32xf32>
    %112 = vector.extract_strided_slice %101 {offsets = [0, 32], sizes = [8, 32], strides = [1, 1]} : vector<8x96xf32> to vector<8x32xf32>
    %113 = vector.extract_strided_slice %98 {offsets = [0, 32], sizes = [8, 32], strides = [1, 1]} : vector<8x96xf32> to vector<8x32xf32>
    %114 = arith.addf %112, %113 : vector<8x32xf32>
    %cst_28 = arith.constant 5.000000e-01 : f32
    %115 = vector.broadcast %cst_28 : f32 to vector<8x32xf32>
    %116 = arith.mulf %115, %114 : vector<8x32xf32>
    %117 = math.tanh %116 : vector<8x32xf32>
    %cst_29 = arith.constant 5.000000e-01 : f32
    %118 = vector.broadcast %cst_29 : f32 to vector<8x32xf32>
    %119 = arith.mulf %118, %117 : vector<8x32xf32>
    %cst_30 = arith.constant 5.000000e-01 : f32
    %120 = vector.broadcast %cst_30 : f32 to vector<8x32xf32>
    %121 = arith.addf %119, %120 : vector<8x32xf32>
    %122 = vector.extract_strided_slice %101 {offsets = [0, 64], sizes = [8, 32], strides = [1, 1]} : vector<8x96xf32> to vector<8x32xf32>
    %123 = vector.extract_strided_slice %98 {offsets = [0, 64], sizes = [8, 32], strides = [1, 1]} : vector<8x96xf32> to vector<8x32xf32>
    %124 = arith.addf %123, %13 : vector<8x32xf32>
    %125 = arith.mulf %111, %124 : vector<8x32xf32>
    %126 = arith.addf %122, %125 : vector<8x32xf32>
    %127 = math.tanh %126 : vector<8x32xf32>
    %cst_31 = arith.constant 1.000000e+00 : f32
    %128 = vector.broadcast %cst_31 : f32 to vector<8x32xf32>
    %129 = arith.subf %128, %121 : vector<8x32xf32>
    %130 = arith.mulf %129, %127 : vector<8x32xf32>
    %131 = arith.mulf %121, %94 : vector<8x32xf32>
    %132 = arith.addf %130, %131 : vector<8x32xf32>
    %133 = tpu.concatenate %132, %132 in 1 : vector<8x32xf32>, vector<8x32xf32> -> vector<8x64xf32>
    %134 = arith.mulf %133, %30 : vector<8x64xf32>
    %135 = arith.truncf %134 : vector<8x64xf32> to vector<8x64xbf16>
    %cst_32 = arith.constant dense<0.000000e+00> : vector<8x96xf32>
    %136 = tpu.matmul %135, %12, %cst_32 {dimension_numbers = #tpu.dot_dimension_numbers<[1], [0], [0], [1], [0, 0, 1, 1], [], []>} : vector<8x64xbf16>, vector<64x96xbf16>, vector<8x96xf32> -> vector<8x96xf32>
    %137 = vector.extract_strided_slice %11 {offsets = [12, 0], sizes = [4, 96], strides = [1, 1]} : vector<64x96xf32> to vector<4x96xf32>
    %138 = vector.extract_strided_slice %11 {offsets = [48, 0], sizes = [4, 96], strides = [1, 1]} : vector<64x96xf32> to vector<4x96xf32>
    %139 = tpu.concatenate %137, %138 in 0 : vector<4x96xf32>, vector<4x96xf32> -> vector<8x96xf32>
    %140 = vector.extract_strided_slice %139 {offsets = [0, 0], sizes = [8, 32], strides = [1, 1]} : vector<8x96xf32> to vector<8x32xf32>
    %141 = vector.extract_strided_slice %136 {offsets = [0, 0], sizes = [8, 32], strides = [1, 1]} : vector<8x96xf32> to vector<8x32xf32>
    %142 = arith.addf %140, %141 : vector<8x32xf32>
    %cst_33 = arith.constant 5.000000e-01 : f32
    %143 = vector.broadcast %cst_33 : f32 to vector<8x32xf32>
    %144 = arith.mulf %143, %142 : vector<8x32xf32>
    %145 = math.tanh %144 : vector<8x32xf32>
    %cst_34 = arith.constant 5.000000e-01 : f32
    %146 = vector.broadcast %cst_34 : f32 to vector<8x32xf32>
    %147 = arith.mulf %146, %145 : vector<8x32xf32>
    %cst_35 = arith.constant 5.000000e-01 : f32
    %148 = vector.broadcast %cst_35 : f32 to vector<8x32xf32>
    %149 = arith.addf %147, %148 : vector<8x32xf32>
    %150 = vector.extract_strided_slice %139 {offsets = [0, 32], sizes = [8, 32], strides = [1, 1]} : vector<8x96xf32> to vector<8x32xf32>
    %151 = vector.extract_strided_slice %136 {offsets = [0, 32], sizes = [8, 32], strides = [1, 1]} : vector<8x96xf32> to vector<8x32xf32>
    %152 = arith.addf %150, %151 : vector<8x32xf32>
    %cst_36 = arith.constant 5.000000e-01 : f32
    %153 = vector.broadcast %cst_36 : f32 to vector<8x32xf32>
    %154 = arith.mulf %153, %152 : vector<8x32xf32>
    %155 = math.tanh %154 : vector<8x32xf32>
    %cst_37 = arith.constant 5.000000e-01 : f32
    %156 = vector.broadcast %cst_37 : f32 to vector<8x32xf32>
    %157 = arith.mulf %156, %155 : vector<8x32xf32>
    %cst_38 = arith.constant 5.000000e-01 : f32
    %158 = vector.broadcast %cst_38 : f32 to vector<8x32xf32>
    %159 = arith.addf %157, %158 : vector<8x32xf32>
    %160 = vector.extract_strided_slice %139 {offsets = [0, 64], sizes = [8, 32], strides = [1, 1]} : vector<8x96xf32> to vector<8x32xf32>
    %161 = vector.extract_strided_slice %136 {offsets = [0, 64], sizes = [8, 32], strides = [1, 1]} : vector<8x96xf32> to vector<8x32xf32>
    %162 = arith.addf %161, %13 : vector<8x32xf32>
    %163 = arith.mulf %149, %162 : vector<8x32xf32>
    %164 = arith.addf %160, %163 : vector<8x32xf32>
    %165 = math.tanh %164 : vector<8x32xf32>
    %cst_39 = arith.constant 1.000000e+00 : f32
    %166 = vector.broadcast %cst_39 : f32 to vector<8x32xf32>
    %167 = arith.subf %166, %159 : vector<8x32xf32>
    %168 = arith.mulf %167, %165 : vector<8x32xf32>
    %169 = arith.mulf %159, %132 : vector<8x32xf32>
    %170 = arith.addf %168, %169 : vector<8x32xf32>
    %171 = tpu.concatenate %170, %170 in 1 : vector<8x32xf32>, vector<8x32xf32> -> vector<8x64xf32>
    %172 = arith.mulf %171, %30 : vector<8x64xf32>
    %173 = arith.truncf %172 : vector<8x64xf32> to vector<8x64xbf16>
    %cst_40 = arith.constant dense<0.000000e+00> : vector<8x96xf32>
    %174 = tpu.matmul %173, %12, %cst_40 {dimension_numbers = #tpu.dot_dimension_numbers<[1], [0], [0], [1], [0, 0, 1, 1], [], []>} : vector<8x64xbf16>, vector<64x96xbf16>, vector<8x96xf32> -> vector<8x96xf32>
    %175 = vector.extract_strided_slice %11 {offsets = [16, 0], sizes = [4, 96], strides = [1, 1]} : vector<64x96xf32> to vector<4x96xf32>
    %176 = vector.extract_strided_slice %11 {offsets = [44, 0], sizes = [4, 96], strides = [1, 1]} : vector<64x96xf32> to vector<4x96xf32>
    %177 = tpu.concatenate %175, %176 in 0 : vector<4x96xf32>, vector<4x96xf32> -> vector<8x96xf32>
    %178 = vector.extract_strided_slice %177 {offsets = [0, 0], sizes = [8, 32], strides = [1, 1]} : vector<8x96xf32> to vector<8x32xf32>
    %179 = vector.extract_strided_slice %174 {offsets = [0, 0], sizes = [8, 32], strides = [1, 1]} : vector<8x96xf32> to vector<8x32xf32>
    %180 = arith.addf %178, %179 : vector<8x32xf32>
    %cst_41 = arith.constant 5.000000e-01 : f32
    %181 = vector.broadcast %cst_41 : f32 to vector<8x32xf32>
    %182 = arith.mulf %181, %180 : vector<8x32xf32>
    %183 = math.tanh %182 : vector<8x32xf32>
    %cst_42 = arith.constant 5.000000e-01 : f32
    %184 = vector.broadcast %cst_42 : f32 to vector<8x32xf32>
    %185 = arith.mulf %184, %183 : vector<8x32xf32>
    %cst_43 = arith.constant 5.000000e-01 : f32
    %186 = vector.broadcast %cst_43 : f32 to vector<8x32xf32>
    %187 = arith.addf %185, %186 : vector<8x32xf32>
    %188 = vector.extract_strided_slice %177 {offsets = [0, 32], sizes = [8, 32], strides = [1, 1]} : vector<8x96xf32> to vector<8x32xf32>
    %189 = vector.extract_strided_slice %174 {offsets = [0, 32], sizes = [8, 32], strides = [1, 1]} : vector<8x96xf32> to vector<8x32xf32>
    %190 = arith.addf %188, %189 : vector<8x32xf32>
    %cst_44 = arith.constant 5.000000e-01 : f32
    %191 = vector.broadcast %cst_44 : f32 to vector<8x32xf32>
    %192 = arith.mulf %191, %190 : vector<8x32xf32>
    %193 = math.tanh %192 : vector<8x32xf32>
    %cst_45 = arith.constant 5.000000e-01 : f32
    %194 = vector.broadcast %cst_45 : f32 to vector<8x32xf32>
    %195 = arith.mulf %194, %193 : vector<8x32xf32>
    %cst_46 = arith.constant 5.000000e-01 : f32
    %196 = vector.broadcast %cst_46 : f32 to vector<8x32xf32>
    %197 = arith.addf %195, %196 : vector<8x32xf32>
    %198 = vector.extract_strided_slice %177 {offsets = [0, 64], sizes = [8, 32], strides = [1, 1]} : vector<8x96xf32> to vector<8x32xf32>
    %199 = vector.extract_strided_slice %174 {offsets = [0, 64], sizes = [8, 32], strides = [1, 1]} : vector<8x96xf32> to vector<8x32xf32>
    %200 = arith.addf %199, %13 : vector<8x32xf32>
    %201 = arith.mulf %187, %200 : vector<8x32xf32>
    %202 = arith.addf %198, %201 : vector<8x32xf32>
    %203 = math.tanh %202 : vector<8x32xf32>
    %cst_47 = arith.constant 1.000000e+00 : f32
    %204 = vector.broadcast %cst_47 : f32 to vector<8x32xf32>
    %205 = arith.subf %204, %197 : vector<8x32xf32>
    %206 = arith.mulf %205, %203 : vector<8x32xf32>
    %207 = arith.mulf %197, %170 : vector<8x32xf32>
    %208 = arith.addf %206, %207 : vector<8x32xf32>
    %209 = tpu.concatenate %208, %208 in 1 : vector<8x32xf32>, vector<8x32xf32> -> vector<8x64xf32>
    %210 = arith.mulf %209, %30 : vector<8x64xf32>
    %211 = arith.truncf %210 : vector<8x64xf32> to vector<8x64xbf16>
    %cst_48 = arith.constant dense<0.000000e+00> : vector<8x96xf32>
    %212 = tpu.matmul %211, %12, %cst_48 {dimension_numbers = #tpu.dot_dimension_numbers<[1], [0], [0], [1], [0, 0, 1, 1], [], []>} : vector<8x64xbf16>, vector<64x96xbf16>, vector<8x96xf32> -> vector<8x96xf32>
    %213 = vector.extract_strided_slice %11 {offsets = [20, 0], sizes = [4, 96], strides = [1, 1]} : vector<64x96xf32> to vector<4x96xf32>
    %214 = vector.extract_strided_slice %11 {offsets = [40, 0], sizes = [4, 96], strides = [1, 1]} : vector<64x96xf32> to vector<4x96xf32>
    %215 = tpu.concatenate %213, %214 in 0 : vector<4x96xf32>, vector<4x96xf32> -> vector<8x96xf32>
    %216 = vector.extract_strided_slice %215 {offsets = [0, 0], sizes = [8, 32], strides = [1, 1]} : vector<8x96xf32> to vector<8x32xf32>
    %217 = vector.extract_strided_slice %212 {offsets = [0, 0], sizes = [8, 32], strides = [1, 1]} : vector<8x96xf32> to vector<8x32xf32>
    %218 = arith.addf %216, %217 : vector<8x32xf32>
    %cst_49 = arith.constant 5.000000e-01 : f32
    %219 = vector.broadcast %cst_49 : f32 to vector<8x32xf32>
    %220 = arith.mulf %219, %218 : vector<8x32xf32>
    %221 = math.tanh %220 : vector<8x32xf32>
    %cst_50 = arith.constant 5.000000e-01 : f32
    %222 = vector.broadcast %cst_50 : f32 to vector<8x32xf32>
    %223 = arith.mulf %222, %221 : vector<8x32xf32>
    %cst_51 = arith.constant 5.000000e-01 : f32
    %224 = vector.broadcast %cst_51 : f32 to vector<8x32xf32>
    %225 = arith.addf %223, %224 : vector<8x32xf32>
    %226 = vector.extract_strided_slice %215 {offsets = [0, 32], sizes = [8, 32], strides = [1, 1]} : vector<8x96xf32> to vector<8x32xf32>
    %227 = vector.extract_strided_slice %212 {offsets = [0, 32], sizes = [8, 32], strides = [1, 1]} : vector<8x96xf32> to vector<8x32xf32>
    %228 = arith.addf %226, %227 : vector<8x32xf32>
    %cst_52 = arith.constant 5.000000e-01 : f32
    %229 = vector.broadcast %cst_52 : f32 to vector<8x32xf32>
    %230 = arith.mulf %229, %228 : vector<8x32xf32>
    %231 = math.tanh %230 : vector<8x32xf32>
    %cst_53 = arith.constant 5.000000e-01 : f32
    %232 = vector.broadcast %cst_53 : f32 to vector<8x32xf32>
    %233 = arith.mulf %232, %231 : vector<8x32xf32>
    %cst_54 = arith.constant 5.000000e-01 : f32
    %234 = vector.broadcast %cst_54 : f32 to vector<8x32xf32>
    %235 = arith.addf %233, %234 : vector<8x32xf32>
    %236 = vector.extract_strided_slice %215 {offsets = [0, 64], sizes = [8, 32], strides = [1, 1]} : vector<8x96xf32> to vector<8x32xf32>
    %237 = vector.extract_strided_slice %212 {offsets = [0, 64], sizes = [8, 32], strides = [1, 1]} : vector<8x96xf32> to vector<8x32xf32>
    %238 = arith.addf %237, %13 : vector<8x32xf32>
    %239 = arith.mulf %225, %238 : vector<8x32xf32>
    %240 = arith.addf %236, %239 : vector<8x32xf32>
    %241 = math.tanh %240 : vector<8x32xf32>
    %cst_55 = arith.constant 1.000000e+00 : f32
    %242 = vector.broadcast %cst_55 : f32 to vector<8x32xf32>
    %243 = arith.subf %242, %235 : vector<8x32xf32>
    %244 = arith.mulf %243, %241 : vector<8x32xf32>
    %245 = arith.mulf %235, %208 : vector<8x32xf32>
    %246 = arith.addf %244, %245 : vector<8x32xf32>
    %247 = tpu.concatenate %246, %246 in 1 : vector<8x32xf32>, vector<8x32xf32> -> vector<8x64xf32>
    %248 = arith.mulf %247, %30 : vector<8x64xf32>
    %249 = arith.truncf %248 : vector<8x64xf32> to vector<8x64xbf16>
    %cst_56 = arith.constant dense<0.000000e+00> : vector<8x96xf32>
    %250 = tpu.matmul %249, %12, %cst_56 {dimension_numbers = #tpu.dot_dimension_numbers<[1], [0], [0], [1], [0, 0, 1, 1], [], []>} : vector<8x64xbf16>, vector<64x96xbf16>, vector<8x96xf32> -> vector<8x96xf32>
    %251 = vector.extract_strided_slice %11 {offsets = [24, 0], sizes = [4, 96], strides = [1, 1]} : vector<64x96xf32> to vector<4x96xf32>
    %252 = vector.extract_strided_slice %11 {offsets = [36, 0], sizes = [4, 96], strides = [1, 1]} : vector<64x96xf32> to vector<4x96xf32>
    %253 = tpu.concatenate %251, %252 in 0 : vector<4x96xf32>, vector<4x96xf32> -> vector<8x96xf32>
    %254 = vector.extract_strided_slice %253 {offsets = [0, 0], sizes = [8, 32], strides = [1, 1]} : vector<8x96xf32> to vector<8x32xf32>
    %255 = vector.extract_strided_slice %250 {offsets = [0, 0], sizes = [8, 32], strides = [1, 1]} : vector<8x96xf32> to vector<8x32xf32>
    %256 = arith.addf %254, %255 : vector<8x32xf32>
    %cst_57 = arith.constant 5.000000e-01 : f32
    %257 = vector.broadcast %cst_57 : f32 to vector<8x32xf32>
    %258 = arith.mulf %257, %256 : vector<8x32xf32>
    %259 = math.tanh %258 : vector<8x32xf32>
    %cst_58 = arith.constant 5.000000e-01 : f32
    %260 = vector.broadcast %cst_58 : f32 to vector<8x32xf32>
    %261 = arith.mulf %260, %259 : vector<8x32xf32>
    %cst_59 = arith.constant 5.000000e-01 : f32
    %262 = vector.broadcast %cst_59 : f32 to vector<8x32xf32>
    %263 = arith.addf %261, %262 : vector<8x32xf32>
    %264 = vector.extract_strided_slice %253 {offsets = [0, 32], sizes = [8, 32], strides = [1, 1]} : vector<8x96xf32> to vector<8x32xf32>
    %265 = vector.extract_strided_slice %250 {offsets = [0, 32], sizes = [8, 32], strides = [1, 1]} : vector<8x96xf32> to vector<8x32xf32>
    %266 = arith.addf %264, %265 : vector<8x32xf32>
    %cst_60 = arith.constant 5.000000e-01 : f32
    %267 = vector.broadcast %cst_60 : f32 to vector<8x32xf32>
    %268 = arith.mulf %267, %266 : vector<8x32xf32>
    %269 = math.tanh %268 : vector<8x32xf32>
    %cst_61 = arith.constant 5.000000e-01 : f32
    %270 = vector.broadcast %cst_61 : f32 to vector<8x32xf32>
    %271 = arith.mulf %270, %269 : vector<8x32xf32>
    %cst_62 = arith.constant 5.000000e-01 : f32
    %272 = vector.broadcast %cst_62 : f32 to vector<8x32xf32>
    %273 = arith.addf %271, %272 : vector<8x32xf32>
    %274 = vector.extract_strided_slice %253 {offsets = [0, 64], sizes = [8, 32], strides = [1, 1]} : vector<8x96xf32> to vector<8x32xf32>
    %275 = vector.extract_strided_slice %250 {offsets = [0, 64], sizes = [8, 32], strides = [1, 1]} : vector<8x96xf32> to vector<8x32xf32>
    %276 = arith.addf %275, %13 : vector<8x32xf32>
    %277 = arith.mulf %263, %276 : vector<8x32xf32>
    %278 = arith.addf %274, %277 : vector<8x32xf32>
    %279 = math.tanh %278 : vector<8x32xf32>
    %cst_63 = arith.constant 1.000000e+00 : f32
    %280 = vector.broadcast %cst_63 : f32 to vector<8x32xf32>
    %281 = arith.subf %280, %273 : vector<8x32xf32>
    %282 = arith.mulf %281, %279 : vector<8x32xf32>
    %283 = arith.mulf %273, %246 : vector<8x32xf32>
    %284 = arith.addf %282, %283 : vector<8x32xf32>
    %285 = tpu.concatenate %284, %284 in 1 : vector<8x32xf32>, vector<8x32xf32> -> vector<8x64xf32>
    %286 = arith.mulf %285, %30 : vector<8x64xf32>
    %287 = arith.truncf %286 : vector<8x64xf32> to vector<8x64xbf16>
    %cst_64 = arith.constant dense<0.000000e+00> : vector<8x96xf32>
    %288 = tpu.matmul %287, %12, %cst_64 {dimension_numbers = #tpu.dot_dimension_numbers<[1], [0], [0], [1], [0, 0, 1, 1], [], []>} : vector<8x64xbf16>, vector<64x96xbf16>, vector<8x96xf32> -> vector<8x96xf32>
    %289 = vector.extract_strided_slice %11 {offsets = [28, 0], sizes = [4, 96], strides = [1, 1]} : vector<64x96xf32> to vector<4x96xf32>
    %290 = vector.extract_strided_slice %11 {offsets = [32, 0], sizes = [4, 96], strides = [1, 1]} : vector<64x96xf32> to vector<4x96xf32>
    %291 = tpu.concatenate %289, %290 in 0 : vector<4x96xf32>, vector<4x96xf32> -> vector<8x96xf32>
    %292 = vector.extract_strided_slice %291 {offsets = [0, 0], sizes = [8, 32], strides = [1, 1]} : vector<8x96xf32> to vector<8x32xf32>
    %293 = vector.extract_strided_slice %288 {offsets = [0, 0], sizes = [8, 32], strides = [1, 1]} : vector<8x96xf32> to vector<8x32xf32>
    %294 = arith.addf %292, %293 : vector<8x32xf32>
    %cst_65 = arith.constant 5.000000e-01 : f32
    %295 = vector.broadcast %cst_65 : f32 to vector<8x32xf32>
    %296 = arith.mulf %295, %294 : vector<8x32xf32>
    %297 = math.tanh %296 : vector<8x32xf32>
    %cst_66 = arith.constant 5.000000e-01 : f32
    %298 = vector.broadcast %cst_66 : f32 to vector<8x32xf32>
    %299 = arith.mulf %298, %297 : vector<8x32xf32>
    %cst_67 = arith.constant 5.000000e-01 : f32
    %300 = vector.broadcast %cst_67 : f32 to vector<8x32xf32>
    %301 = arith.addf %299, %300 : vector<8x32xf32>
    %302 = vector.extract_strided_slice %291 {offsets = [0, 32], sizes = [8, 32], strides = [1, 1]} : vector<8x96xf32> to vector<8x32xf32>
    %303 = vector.extract_strided_slice %288 {offsets = [0, 32], sizes = [8, 32], strides = [1, 1]} : vector<8x96xf32> to vector<8x32xf32>
    %304 = arith.addf %302, %303 : vector<8x32xf32>
    %cst_68 = arith.constant 5.000000e-01 : f32
    %305 = vector.broadcast %cst_68 : f32 to vector<8x32xf32>
    %306 = arith.mulf %305, %304 : vector<8x32xf32>
    %307 = math.tanh %306 : vector<8x32xf32>
    %cst_69 = arith.constant 5.000000e-01 : f32
    %308 = vector.broadcast %cst_69 : f32 to vector<8x32xf32>
    %309 = arith.mulf %308, %307 : vector<8x32xf32>
    %cst_70 = arith.constant 5.000000e-01 : f32
    %310 = vector.broadcast %cst_70 : f32 to vector<8x32xf32>
    %311 = arith.addf %309, %310 : vector<8x32xf32>
    %312 = vector.extract_strided_slice %291 {offsets = [0, 64], sizes = [8, 32], strides = [1, 1]} : vector<8x96xf32> to vector<8x32xf32>
    %313 = vector.extract_strided_slice %288 {offsets = [0, 64], sizes = [8, 32], strides = [1, 1]} : vector<8x96xf32> to vector<8x32xf32>
    %314 = arith.addf %313, %13 : vector<8x32xf32>
    %315 = arith.mulf %301, %314 : vector<8x32xf32>
    %316 = arith.addf %312, %315 : vector<8x32xf32>
    %317 = math.tanh %316 : vector<8x32xf32>
    %cst_71 = arith.constant 1.000000e+00 : f32
    %318 = vector.broadcast %cst_71 : f32 to vector<8x32xf32>
    %319 = arith.subf %318, %311 : vector<8x32xf32>
    %320 = arith.mulf %319, %317 : vector<8x32xf32>
    %321 = arith.mulf %311, %284 : vector<8x32xf32>
    %322 = arith.addf %320, %321 : vector<8x32xf32>
    %323 = vector.extract_strided_slice %322 {offsets = [0, 0], sizes = [4, 32], strides = [1, 1]} : vector<8x32xf32> to vector<4x32xf32>
    %324 = vector.extract_strided_slice %322 {offsets = [4, 0], sizes = [4, 32], strides = [1, 1]} : vector<8x32xf32> to vector<4x32xf32>
    %325 = tpu.concatenate %323, %324 in 1 : vector<4x32xf32>, vector<4x32xf32> -> vector<4x64xf32>
    %c0_72 = arith.constant 0 : index
    %c0_73 = arith.constant 0 : index
    %326 = vector.load %arg6[%c0_72, %c0_73] : memref<64x32xf32, #tpu.memory_space<vmem>>, vector<64x32xf32>
    %cst_74 = arith.constant dense<0.000000e+00> : vector<4x32xf32>
    %327 = tpu.matmul %325, %326, %cst_74 {dimension_numbers = #tpu.dot_dimension_numbers<[1], [0], [0], [1], [0, 0, 1, 1], [], []>} : vector<4x64xf32>, vector<64x32xf32>, vector<4x32xf32> -> vector<4x32xf32>
    %c0_75 = arith.constant 0 : index
    %c0_76 = arith.constant 0 : index
    %328 = vector.load %arg7[%c0_75, %c0_76] : memref<1x32xf32, #tpu.memory_space<vmem>>, vector<1x32xf32>
    %329 = vector.broadcast %328 : vector<1x32xf32> to vector<4x32xf32>
    %330 = arith.addf %327, %329 : vector<4x32xf32>
    %cst_77 = arith.constant dense<0.000000e+00> : vector<32xf32>
    %331 = vector.multi_reduction <add>, %330, %cst_77 [0] : vector<4x32xf32> to vector<32xf32>
    %332 = vector.shape_cast %331 : vector<32xf32> to vector<1x32xf32>
    %cst_78 = arith.constant 4.000000e+00 : f32
    %333 = vector.broadcast %cst_78 : f32 to vector<1x32xf32>
    %334 = arith.divf %332, %333 : vector<1x32xf32>
    %335 = vector.broadcast %334 : vector<1x32xf32> to vector<4x32xf32>
    %336 = arith.subf %330, %335 : vector<4x32xf32>
    %337 = arith.mulf %336, %336 : vector<4x32xf32>
    %cst_79 = arith.constant dense<0.000000e+00> : vector<32xf32>
    %338 = vector.multi_reduction <add>, %337, %cst_79 [0] : vector<4x32xf32> to vector<32xf32>
    %339 = vector.shape_cast %338 : vector<32xf32> to vector<1x32xf32>
    %cst_80 = arith.constant 4.000000e+00 : f32
    %340 = vector.broadcast %cst_80 : f32 to vector<1x32xf32>
    %341 = arith.divf %339, %340 : vector<1x32xf32>
    %342 = vector.broadcast %334 : vector<1x32xf32> to vector<4x32xf32>
    %343 = arith.subf %330, %342 : vector<4x32xf32>
    %cst_81 = arith.constant 9.99999974E-6 : f32
    %344 = vector.broadcast %cst_81 : f32 to vector<1x32xf32>
    %345 = arith.addf %341, %344 : vector<1x32xf32>
    %346 = math.rsqrt %345 : vector<1x32xf32>
    %347 = vector.broadcast %346 : vector<1x32xf32> to vector<4x32xf32>
    %348 = arith.mulf %343, %347 : vector<4x32xf32>
    %c0_82 = arith.constant 0 : index
    %c0_83 = arith.constant 0 : index
    %349 = vector.load %arg8[%c0_82, %c0_83] : memref<1x32xf32, #tpu.memory_space<vmem>>, vector<1x32xf32>
    %350 = vector.broadcast %349 : vector<1x32xf32> to vector<4x32xf32>
    %351 = arith.mulf %348, %350 : vector<4x32xf32>
    %c0_84 = arith.constant 0 : index
    %c0_85 = arith.constant 0 : index
    %352 = vector.load %arg9[%c0_84, %c0_85] : memref<1x32xf32, #tpu.memory_space<vmem>>, vector<1x32xf32>
    %353 = vector.broadcast %352 : vector<1x32xf32> to vector<4x32xf32>
    %354 = arith.addf %351, %353 : vector<4x32xf32>
    %c0_86 = arith.constant 0 : index
    %c0_87 = arith.constant 0 : index
    %355 = vector.load %arg1[%c0_86, %c0_87] : memref<4x1xi32, #tpu.memory_space<vmem>>, vector<4x1xi32>
    %356 = tpu.iota {dimensions = array<i32: 1>} : vector<4x10xi32>
    %357 = vector.broadcast %355 : vector<4x1xi32> to vector<4x10xi32>
    %358 = arith.cmpi eq, %357, %356 : vector<4x10xi32>
    %359 = arith.extui %358 : vector<4x10xi1> to vector<4x10xi32>
    %360 = arith.sitofp %359 : vector<4x10xi32> to vector<4x10xf32>
    %c0_88 = arith.constant 0 : index
    %c0_89 = arith.constant 0 : index
    %361 = vector.load %arg5[%c0_88, %c0_89] : memref<10x32xf32, #tpu.memory_space<vmem>>, vector<10x32xf32>
    %cst_90 = arith.constant dense<0.000000e+00> : vector<4x32xf32>
    %362 = tpu.matmul %360, %361, %cst_90 {dimension_numbers = #tpu.dot_dimension_numbers<[1], [0], [0], [1], [0, 0, 1, 1], [], []>} : vector<4x10xf32>, vector<10x32xf32>, vector<4x32xf32> -> vector<4x32xf32>
    %363 = arith.addf %354, %362 : vector<4x32xf32>
    %cst_91 = arith.constant 0.000000e+00 : f32
    %364 = vector.broadcast %cst_91 : f32 to vector<4x32xf32>
    %365 = arith.maximumf %363, %364 : vector<4x32xf32>
    %c0_92 = arith.constant 0 : index
    %c0_93 = arith.constant 0 : index
    %366 = vector.load %arg10[%c0_92, %c0_93] : memref<32x3xf32, #tpu.memory_space<vmem>>, vector<32x3xf32>
    %cst_94 = arith.constant dense<0.000000e+00> : vector<4x3xf32>
    %367 = tpu.matmul %365, %366, %cst_94 {dimension_numbers = #tpu.dot_dimension_numbers<[1], [0], [0], [1], [0, 0, 1, 1], [], []>} : vector<4x32xf32>, vector<32x3xf32>, vector<4x3xf32> -> vector<4x3xf32>
    %c0_95 = arith.constant 0 : index
    %c0_96 = arith.constant 0 : index
    %368 = vector.load %arg11[%c0_95, %c0_96] : memref<1x3xf32, #tpu.memory_space<vmem>>, vector<1x3xf32>
    %369 = vector.broadcast %368 : vector<1x3xf32> to vector<4x3xf32>
    %370 = arith.addf %367, %369 : vector<4x3xf32>
    %c0_97 = arith.constant 0 : index
    %c0_98 = arith.constant 0 : index
    %371 = vector.load %arg12[%c0_97, %c0_98] : memref<4x3xf32, #tpu.memory_space<vmem>>, vector<4x3xf32>
    tpu.vector_store %arg12[%c0_97, %c0_98], %370 {strides = array<i32>} : memref<4x3xf32, #tpu.memory_space<vmem>>, vector<4x3xf32>,
    return
  }
}

</mosaic_0001>

<llo_original>
// kernel: bigru_aspect_forward.1
$region0: #{bigru_aspect_forward.1}
  #allocation0 [shape = 'u32[]', space=smem, size = 0x4, offset = 0x4, fixed_abs, tag = 'smem constant byte address 0x4 - core index']
  #allocation1 [shape = 'u32[72,128]{1,0:T(1,128)}', space=vmem, size = 0x9000, scoped, tag = 'internal scratch']
  %s0 = inlined_call_operand.vmem [shape: s32[32,1], index: 0, kind: input, shape index: {}]
  %s1 = inlined_call_operand.vmem [shape: s32[4,1], index: 1, kind: input, shape index: {}]
  %s2 = inlined_call_operand.vmem [shape: bf16[128,96], index: 2, kind: input, shape index: {}]
  %s3 = inlined_call_operand.vmem [shape: bf16[64,96], index: 3, kind: input, shape index: {}]
  %s4 = inlined_call_operand.vmem [shape: f32[8,32], index: 4, kind: input, shape index: {}]
  %s5 = inlined_call_operand.vmem [shape: f32[10,32], index: 5, kind: input, shape index: {}]
  %s6 = inlined_call_operand.vmem [shape: f32[64,32], index: 6, kind: input, shape index: {}]
  %s7 = inlined_call_operand.vmem [shape: f32[1,32], index: 7, kind: input, shape index: {}]
  %s8 = inlined_call_operand.vmem [shape: f32[1,32], index: 8, kind: input, shape index: {}]
  %s9 = inlined_call_operand.vmem [shape: f32[1,32], index: 9, kind: input, shape index: {}]
  %s10 = inlined_call_operand.vmem [shape: f32[32,3], index: 10, kind: input, shape index: {}]
  %s11 = inlined_call_operand.vmem [shape: f32[1,3], index: 11, kind: input, shape index: {}]
  %s12 = inlined_call_operand.hbm [shape: f32[4,3], index: 12, kind: output, shape index: {}]
  %s13 = sld [smem:[#allocation0]]
  $region58: #{bigru_aspect_forward.1} parent=0
    _
  %s15 = ssub.s32 1, %s13
  %s16 = scalar_select 0, %s15, %s13
  $region1: #{bigru_aspect_forward.1} parent=0
    #allocation2 [shape = 'u8[2048]{0}', space=vmem, size = 0x800, scoped, tag = 'output window, operand 0, single buffered']
    #allocation3 [shape = 's32[1]{0}', space=sflag, size = 0x4, scoped, tag = 'scoped memory for bigru_aspect_forward.1']
    %17 = vsyncpa [#allocation3], 0
    // Predicated region
    $region2: #{bigru_aspect_forward.1} parent=1 // pred_check
      _
    $region3: #{bigru_aspect_forward.1} parent=1 // pred_check_branch
      %19 = sbr.rel (0) target = $region5
    $region4: #{bigru_aspect_forward.1} parent=1 // pred_region
      _
    $region5: #{bigru_aspect_forward.1} parent=1 // pred_fallthru
      _
    // Predicated region
    $region6: #{bigru_aspect_forward.1} parent=1 // pred_check
      _
    $region7: #{bigru_aspect_forward.1} parent=1 // pred_check_branch
      %21 = sbr.rel (0) target = $region9
    $region8: #{bigru_aspect_forward.1} parent=1 // pred_region
      _
    $region9: #{bigru_aspect_forward.1} parent=1 // pred_fallthru
      _
    // Predicated region
    $region10: #{bigru_aspect_forward.1} parent=1 // pred_check
      _
    $region11: #{bigru_aspect_forward.1} parent=1 // pred_check_branch
      %23 = sbr.rel (0) target = $region13
    $region12: #{bigru_aspect_forward.1} parent=1 // pred_region
      _
    $region13: #{bigru_aspect_forward.1} parent=1 // pred_fallthru
      _
    // Predicated region
    $region14: #{bigru_aspect_forward.1} parent=1 // pred_check
      _
    $region15: #{bigru_aspect_forward.1} parent=1 // pred_check_branch
      %25 = sbr.rel (0) target = $region17
    $region16: #{bigru_aspect_forward.1} parent=1 // pred_region
      _
    $region17: #{bigru_aspect_forward.1} parent=1 // pred_fallthru
      _
    // Predicated region
    $region18: #{bigru_aspect_forward.1} parent=1 // pred_check
      _
    $region19: #{bigru_aspect_forward.1} parent=1 // pred_check_branch
      %27 = sbr.rel (0) target = $region21
    $region20: #{bigru_aspect_forward.1} parent=1 // pred_region
      _
    $region21: #{bigru_aspect_forward.1} parent=1 // pred_fallthru
      _
    // Predicated region
    $region22: #{bigru_aspect_forward.1} parent=1 // pred_check
      _
    $region23: #{bigru_aspect_forward.1} parent=1 // pred_check_branch
      %29 = sbr.rel (0) target = $region25
    $region24: #{bigru_aspect_forward.1} parent=1 // pred_region
      _
    $region25: #{bigru_aspect_forward.1} parent=1 // pred_fallthru
      _
    // Predicated region
    $region26: #{bigru_aspect_forward.1} parent=1 // pred_check
      _
    $region27: #{bigru_aspect_forward.1} parent=1 // pred_check_branch
      %31 = sbr.rel (0) target = $region29
    $region28: #{bigru_aspect_forward.1} parent=1 // pred_region
      _
    $region29: #{bigru_aspect_forward.1} parent=1 // pred_fallthru
      _
    // Predicated region
    $region30: #{bigru_aspect_forward.1} parent=1 // pred_check
      _
    $region31: #{bigru_aspect_forward.1} parent=1 // pred_check_branch
      %33 = sbr.rel (0) target = $region33
    $region32: #{bigru_aspect_forward.1} parent=1 // pred_region
      _
    $region33: #{bigru_aspect_forward.1} parent=1 // pred_fallthru
      _
    // Predicated region
    $region34: #{bigru_aspect_forward.1} parent=1 // pred_check
      _
    $region35: #{bigru_aspect_forward.1} parent=1 // pred_check_branch
      %35 = sbr.rel (0) target = $region37
    $region36: #{bigru_aspect_forward.1} parent=1 // pred_region
      _
    $region37: #{bigru_aspect_forward.1} parent=1 // pred_fallthru
      _
    // Predicated region
    $region38: #{bigru_aspect_forward.1} parent=1 // pred_check
      _
    $region39: #{bigru_aspect_forward.1} parent=1 // pred_check_branch
      %37 = sbr.rel (0) target = $region41
    $region40: #{bigru_aspect_forward.1} parent=1 // pred_region
      _
    $region41: #{bigru_aspect_forward.1} parent=1 // pred_fallthru
      _
    // Predicated region
    $region42: #{bigru_aspect_forward.1} parent=1 // pred_check
      _
    $region43: #{bigru_aspect_forward.1} parent=1 // pred_check_branch
      %39 = sbr.rel (0) target = $region45
    $region44: #{bigru_aspect_forward.1} parent=1 // pred_region
      _
    $region45: #{bigru_aspect_forward.1} parent=1 // pred_fallthru
      _
    // Predicated region
    $region46: #{bigru_aspect_forward.1} parent=1 // pred_check
      _
    $region47: #{bigru_aspect_forward.1} parent=1 // pred_check_branch
      %41 = sbr.rel (0) target = $region49
    $region48: #{bigru_aspect_forward.1} parent=1 // pred_region
      _
    $region49: #{bigru_aspect_forward.1} parent=1 // pred_fallthru
      _
    %v43 = vld [vmem:[%s0] sm:$0xff]
    %v44 = vld [vmem:[%s0 + $0x8] sm:$0xff]
    %v45 = vld [vmem:[%s0 + $0x10] sm:$0xff]
    %v46 = vld [vmem:[%s0 + $0x18] sm:$0xff]
    %v47 = vadd.s32 %v43, 50
    %v48 = vadd.s32 %v44, 50
    %v49 = vadd.s32 %v45, 50
    %v50 = vadd.s32 %v46, 50
    %v51 = vlaneseq
    %v52 = vand.u32 %v51, 127
    %53 = vset.pattern.permute.xlu0 0
    %54 = vperm.xlu0 %53, %v43
    %v55 = vpop.permute.xlu0 %54
    %56 = vset.pattern.permute.xlu0 0
    %57 = vperm.xlu0 %56, %v44
    %v58 = vpop.permute.xlu0 %57
    %59 = vset.pattern.permute.xlu0 0
    %60 = vperm.xlu0 %59, %v45
    %v61 = vpop.permute.xlu0 %60
    %62 = vset.pattern.permute.xlu0 0
    %63 = vperm.xlu0 %62, %v46
    %v64 = vpop.permute.xlu0 %63
    %65 = vset.pattern.permute.xlu0 0
    %66 = vperm.xlu0 %65, %v47
    %v67 = vpop.permute.xlu0 %66
    %68 = vset.pattern.permute.xlu0 0
    %69 = vperm.xlu0 %68, %v48
    %v70 = vpop.permute.xlu0 %69
    %71 = vset.pattern.permute.xlu0 0
    %72 = vperm.xlu0 %71, %v49
    %v73 = vpop.permute.xlu0 %72
    %74 = vset.pattern.permute.xlu0 0
    %75 = vperm.xlu0 %74, %v50
    %v76 = vpop.permute.xlu0 %75
    %vm77 = vcmp.eq.s32.totalorder %v55, %v52
    %vm78 = vcmp.eq.s32.totalorder %v58, %v52
    %vm79 = vcmp.eq.s32.totalorder %v61, %v52
    %vm80 = vcmp.eq.s32.totalorder %v64, %v52
    %vm81 = vcmp.eq.s32.totalorder %v67, %v52
    %vm82 = vcmp.eq.s32.totalorder %v70, %v52
    %vm83 = vcmp.eq.s32.totalorder %v73, %v52
    %vm84 = vcmp.eq.s32.totalorder %v76, %v52
    %v85 = vsel %vm77, 1, 0
    %v86 = vsel %vm78, 1, 0
    %v87 = vsel %vm79, 1, 0
    %v88 = vsel %vm80, 1, 0
    %v89 = vsel %vm81, 1, 0
    %v90 = vsel %vm82, 1, 0
    %v91 = vsel %vm83, 1, 0
    %v92 = vsel %vm84, 1, 0
    %v93 = vcvt.s32.f32 %v85
    %v94 = vcvt.s32.f32 %v86
    %v95 = vcvt.s32.f32 %v87
    %v96 = vcvt.s32.f32 %v88
    %v97 = vcvt.s32.f32 %v89
    %v98 = vcvt.s32.f32 %v90
    %v99 = vcvt.s32.f32 %v91
    %v100 = vcvt.s32.f32 %v92
    %v101 = vpack.c.bf16 %v94, %v93
    %v102 = vpack.c.bf16 %v96, %v95
    %v103 = vpack.c.bf16 %v98, %v97
    %v104 = vpack.c.bf16 %v100, %v99
    %v105 = vld [vmem:[%s2] sm:$0xf]
    %v106 = vld [vmem:[%s2 + $0x4] sm:$0xf]
    %v107 = vld [vmem:[%s2 + $0x8] sm:$0xf]
    %v108 = vld [vmem:[%s2 + $0xc] sm:$0xf]
    %v109 = vld [vmem:[%s2 + $0x10] sm:$0xf]
    %v110 = vld [vmem:[%s2 + $0x14] sm:$0xf]
    %v111 = vld [vmem:[%s2 + $0x18] sm:$0xf]
    %v112 = vld [vmem:[%s2 + $0x1c] sm:$0xf]
    %v113 = vld [vmem:[%s2 + $0x20] sm:$0xf]
    %v114 = vld [vmem:[%s2 + $0x24] sm:$0xf]
    %v115 = vld [vmem:[%s2 + $0x28] sm:$0xf]
    %v116 = vld [vmem:[%s2 + $0x2c] sm:$0xf]
    %v117 = vld [vmem:[%s2 + $0x30] sm:$0xf]
    %v118 = vld [vmem:[%s2 + $0x34] sm:$0xf]
    %v119 = vld [vmem:[%s2 + $0x38] sm:$0xf]
    %v120 = vld [vmem:[%s2 + $0x3c] sm:$0xf]
    %v137 = vunpack.c.l.b16 %v105
    %v138 = vunpack.c.l.b16 %v106
    %v139 = vunpack.c.l.b16 %v107
    %v140 = vunpack.c.l.b16 %v108
    %v141 = vunpack.c.l.b16 %v109
    %v142 = vunpack.c.l.b16 %v110
    %v143 = vunpack.c.l.b16 %v111
    %v144 = vunpack.c.l.b16 %v112
    %v145 = vunpack.c.l.b16 %v113
    %v146 = vunpack.c.l.b16 %v114
    %v147 = vunpack.c.l.b16 %v115
    %v148 = vunpack.c.l.b16 %v116
    %v149 = vunpack.c.l.b16 %v117
    %v150 = vunpack.c.l.b16 %v118
    %v151 = vunpack.c.l.b16 %v119
    %v152 = vunpack.c.l.b16 %v120
    %v153 = vpack.c.b16 %v138, %v137
    %v154 = vpack.c.b16 %v140, %v139
    %v155 = vpack.c.b16 %v142, %v141
    %v156 = vpack.c.b16 %v144, %v143
    %v157 = vpack.c.b16 %v146, %v145
    %v158 = vpack.c.b16 %v148, %v147
    %v159 = vpack.c.b16 %v150, %v149
    %v160 = vpack.c.b16 %v152, %v151
    %169 = vmatpush.bf16.msra.mxu0 %v160
    %170 = vmatpush.bf16.msra.mxu0 %v159
    %171 = vmatpush.bf16.msra.mxu0 %v158
    %172 = vmatpush.bf16.msra.mxu0 %v157
    %173 = vmatpush.bf16.msra.mxu0 %v156
    %174 = vmatpush.bf16.msra.mxu0 %v155
    %175 = vmatpush.bf16.msra.mxu0 %v154
    %176 = vmatpush.bf16.msra.mxu0 %v153
    %177 = vmatmul.bf16.gmra.mxu0 %v101
    %v178 = vpop.f32.mrf.mxu0
    %v179 = vadd.f32 0.0, %v178
    %v180 = vpop.f32.mrf.mxu0
    %v181 = vadd.f32 0.0, %v180
    %182 = vmatmul.bf16.gmra.mxu0 %v102
    %v183 = vpop.f32.mrf.mxu0
    %v184 = vadd.f32 0.0, %v183
    %v185 = vpop.f32.mrf.mxu0
    %v186 = vadd.f32 0.0, %v185
    %187 = vmatmul.bf16.gmra.mxu0 %v103
    %v188 = vpop.f32.mrf.mxu0
    %v189 = vadd.f32 0.0, %v188
    %v190 = vpop.f32.mrf.mxu0
    %v191 = vadd.f32 0.0, %v190
    %192 = vmatmul.bf16.gmra.mxu0 %v104
    %v193 = vpop.f32.mrf.mxu0
    %v194 = vadd.f32 0.0, %v193
    %v195 = vpop.f32.mrf.mxu0
    %v196 = vadd.f32 0.0, %v195
    %197 = vdwg.mxu0
    %v198 = vld [vmem:[%s3] sm:$0xf]
    %v199 = vld [vmem:[%s3 + $0x4] sm:$0xf]
    %v200 = vld [vmem:[%s3 + $0x8] sm:$0xf]
    %v201 = vld [vmem:[%s3 + $0xc] sm:$0xf]
    %v202 = vld [vmem:[%s3 + $0x10] sm:$0xf]
    %v203 = vld [vmem:[%s3 + $0x14] sm:$0xf]
    %v204 = vld [vmem:[%s3 + $0x18] sm:$0xf]
    %v205 = vld [vmem:[%s3 + $0x1c] sm:$0xf]
    %v206 = vld [vmem:[%s4] sm:$0xff]
    %v207 = vlaneseq
    %v208 = vshrl.u32 %v207, 7
    %vm209 = vcmp.lt.s32.totalorder %v208, 4
    %v210 = vsel %vm209, 1, 0
    %v211 = vcvt.s32.f32 %v210
    %vm212 = vcmp.lt.s32.totalorder %v52, 32
    %v213 = vsel %vm212, 1, 0
    %v214 = vcvt.s32.f32 %v213
    %v215 = vmul.f32 %v211, %v214
    %v216 = vsub.f32 1.0, %v211
    %v217 = vsub.f32 1.0, %v214
    %v218 = vmul.f32 %v216, %v217
    %v219 = vadd.f32 %v215, %v218
    %vm220 = vcmask 1043456
    %v221 = vsel %vm220, %v179, %v196
    %v222 = vmul.f32 %v221, 0.5
    %v223 = vtanh.pop %v222
    %v224 = vmul.f32 %v223, 0.5
    %v225 = vadd.f32 %v224, 0.5
    %v226 = vmul.f32 %v225, %v206
    %228 = vrot.lane.b32.xlu0 %v226, 64
    %v229 = vpop.permute.xlu0 %228
    %v231 = vadd.f32 %v221, %v229
    %v232 = vtanh.pop %v231
    %v233 = vsub.f32 1.0, %v225
    %235 = vrot.lane.b32.xlu0 %v232, 96
    %v236 = vpop.permute.xlu0 %235
    %v238 = vmul.f32 %v233, %v236
    %240 = vrot.lane.b32.xlu0 %v238, 96
    %v241 = vpop.permute.xlu0 %240
    %vm243 = vcmask 261120
    %v244 = vsel %vm243, %v241, %v238
    %v245 = vmul.f32 %v244, %v219
    %v246 = vpack.c.bf16 %v245, %v245
    %v255 = vunpack.c.l.b16 %v198
    %v256 = vunpack.c.l.b16 %v199
    %v257 = vunpack.c.l.b16 %v200
    %v258 = vunpack.c.l.b16 %v201
    %v259 = vunpack.c.l.b16 %v202
    %v260 = vunpack.c.l.b16 %v203
    %v261 = vunpack.c.l.b16 %v204
    %v262 = vunpack.c.l.b16 %v205
    %v263 = vpack.c.b16 %v256, %v255
    %v264 = vpack.c.b16 %v258, %v257
    %v265 = vpack.c.b16 %v260, %v259
    %v266 = vpack.c.b16 %v262, %v261
    %vm271 = vcmask 523264
    %v273 = vsel %vm271, %v246, 0
    %275 = vmatpush.bf16.msra.mxu0 0
    %276 = vmatpush.bf16.msra.mxu0 0
    %277 = vmatpush.bf16.msra.mxu0 0
    %278 = vmatpush.bf16.msra.mxu0 0
    %279 = vmatpush.bf16.msra.mxu0 %v266
    %280 = vmatpush.bf16.msra.mxu0 %v265
    %281 = vmatpush.bf16.msra.mxu0 %v264
    %282 = vmatpush.bf16.msra.mxu0 %v263
    %283 = vmatmul.bf16.gmra.mxu0 %v273
    %v284 = vpop.f32.mrf.mxu0
    %v285 = vadd.f32 0.0, %v284
    %v286 = vpop.f32.mrf.mxu0
    %287 = vdwg.mxu0
    %v289 = vrot.slane %v179, 4
    %v292 = vrot.slane %v196, 4
    %v294 = vsel %vm220, %v289, %v292
    %v295 = vadd.f32 %v294, %v285
    %v296 = vmul.f32 %v295, 0.5
    %v297 = vtanh.pop %v296
    %v298 = vmul.f32 %v297, 0.5
    %v299 = vadd.f32 %v298, 0.5
    %301 = vrot.lane.b32.xlu0 %v206, 64
    %v302 = vpop.permute.xlu0 %301
    %v304 = vadd.f32 %v285, %v302
    %306 = vrot.lane.b32.xlu0 %v304, 64
    %v307 = vpop.permute.xlu0 %306
    %v309 = vmul.f32 %v299, %v307
    %311 = vrot.lane.b32.xlu0 %v309, 64
    %v312 = vpop.permute.xlu0 %311
    %v314 = vadd.f32 %v294, %v312
    %v315 = vtanh.pop %v314
    %v316 = vsub.f32 1.0, %v299
    %318 = vrot.lane.b32.xlu0 %v315, 96
    %v319 = vpop.permute.xlu0 %318
    %v321 = vmul.f32 %v316, %v319
    %v322 = vmul.f32 %v299, %v238
    %v323 = vadd.f32 %v321, %v322
    %325 = vrot.lane.b32.xlu0 %v323, 96
    %v326 = vpop.permute.xlu0 %325
    %v328 = vsel %vm243, %v326, %v323
    %v329 = vmul.f32 %v328, %v219
    %v330 = vpack.c.bf16 %v329, %v329
    %v332 = vsel %vm271, %v330, 0
    %334 = vmatpush.bf16.msra.mxu0 0
    %335 = vmatpush.bf16.msra.mxu0 0
    %336 = vmatpush.bf16.msra.mxu0 0
    %337 = vmatpush.bf16.msra.mxu0 0
    %338 = vmatpush.bf16.msra.mxu0 %v266
    %339 = vmatpush.bf16.msra.mxu0 %v265
    %340 = vmatpush.bf16.msra.mxu0 %v264
    %341 = vmatpush.bf16.msra.mxu0 %v263
    %342 = vmatmul.bf16.gmra.mxu0 %v332
    %v343 = vpop.f32.mrf.mxu0
    %v344 = vadd.f32 0.0, %v343
    %v345 = vpop.f32.mrf.mxu0
    %346 = vdwg.mxu0
    %v347 = vsel %vm220, %v181, %v194
    %v348 = vadd.f32 %v347, %v344
    %v349 = vmul.f32 %v348, 0.5
    %v350 = vtanh.pop %v349
    %v351 = vmul.f32 %v350, 0.5
    %v352 = vadd.f32 %v351, 0.5
    %v353 = vadd.f32 %v344, %v302
    %355 = vrot.lane.b32.xlu0 %v353, 64
    %v356 = vpop.permute.xlu0 %355
    %v358 = vmul.f32 %v352, %v356
    %360 = vrot.lane.b32.xlu0 %v358, 64
    %v361 = vpop.permute.xlu0 %360
    %v363 = vadd.f32 %v347, %v361
    %v364 = vtanh.pop %v363
    %v365 = vsub.f32 1.0, %v352
    %367 = vrot.lane.b32.xlu0 %v364, 96
    %v368 = vpop.permute.xlu0 %367
    %v370 = vmul.f32 %v365, %v368
    %v371 = vmul.f32 %v352, %v323
    %v372 = vadd.f32 %v370, %v371
    %374 = vrot.lane.b32.xlu0 %v372, 96
    %v375 = vpop.permute.xlu0 %374
    %v377 = vsel %vm243, %v375, %v372
    %v378 = vmul.f32 %v377, %v219
    %v379 = vpack.c.bf16 %v378, %v378
    %v381 = vsel %vm271, %v379, 0
    %383 = vmatpush.bf16.msra.mxu0 0
    %384 = vmatpush.bf16.msra.mxu0 0
    %385 = vmatpush.bf16.msra.mxu0 0
    %386 = vmatpush.bf16.msra.mxu0 0
    %387 = vmatpush.bf16.msra.mxu0 %v266
    %388 = vmatpush.bf16.msra.mxu0 %v265
    %389 = vmatpush.bf16.msra.mxu0 %v264
    %390 = vmatpush.bf16.msra.mxu0 %v263
    %391 = vmatmul.bf16.gmra.mxu0 %v381
    %v392 = vpop.f32.mrf.mxu0
    %v393 = vadd.f32 0.0, %v392
    %v394 = vpop.f32.mrf.mxu0
    %395 = vdwg.mxu0
    %v397 = vrot.slane %v181, 4
    %v400 = vrot.slane %v194, 4
    %v402 = vsel %vm220, %v397, %v400
    %v403 = vadd.f32 %v402, %v393
    %v404 = vmul.f32 %v403, 0.5
    %v405 = vtanh.pop %v404
    %v406 = vmul.f32 %v405, 0.5
    %v407 = vadd.f32 %v406, 0.5
    %v408 = vadd.f32 %v393, %v302
    %410 = vrot.lane.b32.xlu0 %v408, 64
    %v411 = vpop.permute.xlu0 %410
    %v413 = vmul.f32 %v407, %v411
    %415 = vrot.lane.b32.xlu0 %v413, 64
    %v416 = vpop.permute.xlu0 %415
    %v418 = vadd.f32 %v402, %v416
    %v419 = vtanh.pop %v418
    %v420 = vsub.f32 1.0, %v407
    %422 = vrot.lane.b32.xlu0 %v419, 96
    %v423 = vpop.permute.xlu0 %422
    %v425 = vmul.f32 %v420, %v423
    %v426 = vmul.f32 %v407, %v372
    %v427 = vadd.f32 %v425, %v426
    %429 = vrot.lane.b32.xlu0 %v427, 96
    %v430 = vpop.permute.xlu0 %429
    %v432 = vsel %vm243, %v430, %v427
    %v433 = vmul.f32 %v432, %v219
    %v434 = vpack.c.bf16 %v433, %v433
    %v436 = vsel %vm271, %v434, 0
    %438 = vmatpush.bf16.msra.mxu0 0
    %439 = vmatpush.bf16.msra.mxu0 0
    %440 = vmatpush.bf16.msra.mxu0 0
    %441 = vmatpush.bf16.msra.mxu0 0
    %442 = vmatpush.bf16.msra.mxu0 %v266
    %443 = vmatpush.bf16.msra.mxu0 %v265
    %444 = vmatpush.bf16.msra.mxu0 %v264
    %445 = vmatpush.bf16.msra.mxu0 %v263
    %446 = vmatmul.bf16.gmra.mxu0 %v436
    %v447 = vpop.f32.mrf.mxu0
    %v448 = vadd.f32 0.0, %v447
    %v449 = vpop.f32.mrf.mxu0
    %450 = vdwg.mxu0
    %v451 = vsel %vm220, %v184, %v191
    %v452 = vadd.f32 %v451, %v448
    %v453 = vmul.f32 %v452, 0.5
    %v454 = vtanh.pop %v453
    %v455 = vmul.f32 %v454, 0.5
    %v456 = vadd.f32 %v455, 0.5
    %v457 = vadd.f32 %v448, %v302
    %459 = vrot.lane.b32.xlu0 %v457, 64
    %v460 = vpop.permute.xlu0 %459
    %v462 = vmul.f32 %v456, %v460
    %464 = vrot.lane.b32.xlu0 %v462, 64
    %v465 = vpop.permute.xlu0 %464
    %v467 = vadd.f32 %v451, %v465
    %v468 = vtanh.pop %v467
    %v469 = vsub.f32 1.0, %v456
    %471 = vrot.lane.b32.xlu0 %v468, 96
    %v472 = vpop.permute.xlu0 %471
    %v474 = vmul.f32 %v469, %v472
    %v475 = vmul.f32 %v456, %v427
    %v476 = vadd.f32 %v474, %v475
    %478 = vrot.lane.b32.xlu0 %v476, 96
    %v479 = vpop.permute.xlu0 %478
    %v481 = vsel %vm243, %v479, %v476
    %v482 = vmul.f32 %v481, %v219
    %v483 = vpack.c.bf16 %v482, %v482
    %v485 = vsel %vm271, %v483, 0
    %487 = vmatpush.bf16.msra.mxu0 0
    %488 = vmatpush.bf16.msra.mxu0 0
    %489 = vmatpush.bf16.msra.mxu0 0
    %490 = vmatpush.bf16.msra.mxu0 0
    %491 = vmatpush.bf16.msra.mxu0 %v266
    %492 = vmatpush.bf16.msra.mxu0 %v265
    %493 = vmatpush.bf16.msra.mxu0 %v264
    %494 = vmatpush.bf16.msra.mxu0 %v263
    %495 = vmatmul.bf16.gmra.mxu0 %v485
    %v496 = vpop.f32.mrf.mxu0
    %v497 = vadd.f32 0.0, %v496
    %v498 = vpop.f32.mrf.mxu0
    %499 = vdwg.mxu0
    %v501 = vrot.slane %v184, 4
    %v504 = vrot.slane %v191, 4
    %v506 = vsel %vm220, %v501, %v504
    %v507 = vadd.f32 %v506, %v497
    %v508 = vmul.f32 %v507, 0.5
    %v509 = vtanh.pop %v508
    %v510 = vmul.f32 %v509, 0.5
    %v511 = vadd.f32 %v510, 0.5
    %v512 = vadd.f32 %v497, %v302
    %514 = vrot.lane.b32.xlu0 %v512, 64
    %v515 = vpop.permute.xlu0 %514
    %v517 = vmul.f32 %v511, %v515
    %519 = vrot.lane.b32.xlu0 %v517, 64
    %v520 = vpop.permute.xlu0 %519
    %v522 = vadd.f32 %v506, %v520
    %v523 = vtanh.pop %v522
    %v524 = vsub.f32 1.0, %v511
    %526 = vrot.lane.b32.xlu0 %v523, 96
    %v527 = vpop.permute.xlu0 %526
    %v529 = vmul.f32 %v524, %v527
    %v530 = vmul.f32 %v511, %v476
    %v531 = vadd.f32 %v529, %v530
    %533 = vrot.lane.b32.xlu0 %v531, 96
    %v534 = vpop.permute.xlu0 %533
    %v536 = vsel %vm243, %v534, %v531
    %v537 = vmul.f32 %v536, %v219
    %v538 = vpack.c.bf16 %v537, %v537
    %v540 = vsel %vm271, %v538, 0
    %542 = vmatpush.bf16.msra.mxu0 0
    %543 = vmatpush.bf16.msra.mxu0 0
    %544 = vmatpush.bf16.msra.mxu0 0
    %545 = vmatpush.bf16.msra.mxu0 0
    %546 = vmatpush.bf16.msra.mxu0 %v266
    %547 = vmatpush.bf16.msra.mxu0 %v265
    %548 = vmatpush.bf16.msra.mxu0 %v264
    %549 = vmatpush.bf16.msra.mxu0 %v263
    %550 = vmatmul.bf16.gmra.mxu0 %v540
    %v551 = vpop.f32.mrf.mxu0
    %v552 = vadd.f32 0.0, %v551
    %v553 = vpop.f32.mrf.mxu0
    %554 = vdwg.mxu0
    %v555 = vsel %vm220, %v186, %v189
    %v556 = vadd.f32 %v555, %v552
    %v557 = vmul.f32 %v556, 0.5
    %v558 = vtanh.pop %v557
    %v559 = vmul.f32 %v558, 0.5
    %v560 = vadd.f32 %v559, 0.5
    %v561 = vadd.f32 %v552, %v302
    %563 = vrot.lane.b32.xlu0 %v561, 64
    %v564 = vpop.permute.xlu0 %563
    %v566 = vmul.f32 %v560, %v564
    %568 = vrot.lane.b32.xlu0 %v566, 64
    %v569 = vpop.permute.xlu0 %568
    %v571 = vadd.f32 %v555, %v569
    %v572 = vtanh.pop %v571
    %v573 = vsub.f32 1.0, %v560
    %575 = vrot.lane.b32.xlu0 %v572, 96
    %v576 = vpop.permute.xlu0 %575
    %v578 = vmul.f32 %v573, %v576
    %v579 = vmul.f32 %v560, %v531
    %v580 = vadd.f32 %v578, %v579
    %582 = vrot.lane.b32.xlu0 %v580, 96
    %v583 = vpop.permute.xlu0 %582
    %v585 = vsel %vm243, %v583, %v580
    %v586 = vmul.f32 %v585, %v219
    %v587 = vpack.c.bf16 %v586, %v586
    %v589 = vsel %vm271, %v587, 0
    %591 = vmatpush.bf16.msra.mxu0 0
    %592 = vmatpush.bf16.msra.mxu0 0
    %593 = vmatpush.bf16.msra.mxu0 0
    %594 = vmatpush.bf16.msra.mxu0 0
    %595 = vmatpush.bf16.msra.mxu0 %v266
    %596 = vmatpush.bf16.msra.mxu0 %v265
    %597 = vmatpush.bf16.msra.mxu0 %v264
    %598 = vmatpush.bf16.msra.mxu0 %v263
    %599 = vmatmul.bf16.gmra.mxu0 %v589
    %v600 = vpop.f32.mrf.mxu0
    %v601 = vadd.f32 0.0, %v600
    %v602 = vpop.f32.mrf.mxu0
    %603 = vdwg.mxu0
    %v605 = vrot.slane %v186, 4
    %v608 = vrot.slane %v189, 4
    %v610 = vsel %vm220, %v605, %v608
    %v611 = vadd.f32 %v610, %v601
    %v612 = vmul.f32 %v611, 0.5
    %v613 = vtanh.pop %v612
    %v614 = vmul.f32 %v613, 0.5
    %v615 = vadd.f32 %v614, 0.5
    %v616 = vadd.f32 %v601, %v302
    %618 = vrot.lane.b32.xlu0 %v616, 64
    %v619 = vpop.permute.xlu0 %618
    %v621 = vmul.f32 %v615, %v619
    %623 = vrot.lane.b32.xlu0 %v621, 64
    %v624 = vpop.permute.xlu0 %623
    %v626 = vadd.f32 %v610, %v624
    %v627 = vtanh.pop %v626
    %v628 = vsub.f32 1.0, %v615
    %630 = vrot.lane.b32.xlu0 %v627, 96
    %v631 = vpop.permute.xlu0 %630
    %v633 = vmul.f32 %v628, %v631
    %v634 = vmul.f32 %v615, %v580
    %v635 = vadd.f32 %v633, %v634
    %637 = vrot.lane.b32.xlu0 %v635, 96
    %v638 = vpop.permute.xlu0 %637
    %v640 = vrot.slane %v635, 4
    %v642 = vsel %vm243, %v638, %v640
    %v643 = vld [vmem:[%s6] sm:$0xff]
    %v644 = vld [vmem:[%s6 + $0x8] sm:$0xff]
    %v645 = vld [vmem:[%s6 + $0x10] sm:$0xff]
    %v646 = vld [vmem:[%s6 + $0x18] sm:$0xff]
    %v647 = vld [vmem:[%s6 + $0x20] sm:$0xff]
    %v648 = vld [vmem:[%s6 + $0x28] sm:$0xff]
    %v649 = vld [vmem:[%s6 + $0x30] sm:$0xff]
    %v650 = vld [vmem:[%s6 + $0x38] sm:$0xff]
    %v651 = vld [vmem:[%s7] sm:$0x1]
    %v653 = vperm.slane %v651, 0
    %v656 = vsel %vm271, %v642, 0
    %658 = vmatpush.msra.mxu0 0.0
    %659 = vmatpush.msra.mxu0 0.0
    %660 = vmatpush.msra.mxu0 0.0
    %661 = vmatpush.msra.mxu0 0.0
    %662 = vmatpush.msra.mxu0 0.0
    %663 = vmatpush.msra.mxu0 0.0
    %664 = vmatpush.msra.mxu0 0.0
    %665 = vmatpush.msra.mxu0 0.0
    %666 = vmatpush.msra.mxu0 %v650
    %667 = vmatpush.msra.mxu0 %v649
    %668 = vmatpush.msra.mxu0 %v648
    %669 = vmatpush.msra.mxu0 %v647
    %670 = vmatpush.msra.mxu0 %v646
    %671 = vmatpush.msra.mxu0 %v645
    %672 = vmatpush.msra.mxu0 %v644
    %673 = vmatpush.msra.mxu0 %v643
    %674 = vmatmul.f32.gmra.mxu0 %v656
    %v675 = vpop.f32.mrf.mxu0
    %v676 = vadd.f32 %v653, %v675
    %677 = vdwg.mxu0
    %vm678 = vcmask 257024
    %v679 = vsel %vm678, %v676, 0.0
    %v680 = vrot.slane %v679, 4
    %v681 = vadd.f32 %v679, %v680
    %v682 = vrot.slane %v681, 2
    %v683 = vadd.f32 %v681, %v682
    %v684 = vrot.slane %v683, 1
    %v685 = vadd.f32 %v683, %v684
    %v686 = vrcp.pop 4.0
    %v687 = vmul.f32 4.0, %v686
    %v688 = vsub.f32 1.0, %v687
    %v689 = vmul.f32 %v686, %v688
    %v690 = vadd.f32 %v686, %v689
    %vm691 = vweird.f32 %v686
    %v692 = vsel %vm691, %v686, %v690
    %v693 = vmul.f32 %v685, %v692
    %v694 = vsub.f32 %v676, %v693
    %v695 = vmul.f32 %v694, %v694
    %v696 = vsel %vm678, %v695, 0.0
    %v697 = vrot.slane %v696, 4
    %v698 = vadd.f32 %v696, %v697
    %v699 = vrot.slane %v698, 2
    %v700 = vadd.f32 %v698, %v699
    %v701 = vrot.slane %v700, 1
    %v702 = vadd.f32 %v700, %v701
    %v703 = vmul.f32 %v702, %v692
    %v704 = vadd.f32 %v703, 1e-05
    %v705 = vrsqrt.pop %v704
    %v706 = vmul.f32 %v705, %v704
    %v707 = vmul.f32 %v706, %v705
    %v708 = vmul.f32 0.5, %v707
    %v709 = vsub.f32 1.5, %v708
    %v710 = vmul.f32 %v705, %v709
    %vm711 = vweird.f32 %v704
    %vm712 = vweird.f32 %v705
    %vm713 = vmor %vm711, %vm712
    %v714 = vsel %vm713, %v705, %v710
    %v715 = vmul.f32 %v694, %v714
    %v716 = vld [vmem:[%s8] sm:$0x1]
    %v718 = vperm.slane %v716, 0
    %v720 = vmul.f32 %v715, %v718
    %v721 = vld [vmem:[%s9] sm:$0x1]
    %v723 = vperm.slane %v721, 0
    %v725 = vadd.f32 %v720, %v723
    %v726 = vld [vmem:[%s1] sm:$0xf]
    %727 = vset.pattern.permute.xlu0 0
    %728 = vperm.xlu0 %727, %v726
    %v729 = vpop.permute.xlu0 %728
    %vm730 = vcmp.eq.s32.totalorder %v729, %v52
    %v731 = vsel %vm730, 1, 0
    %v732 = vcvt.s32.f32 %v731
    %v733 = vld [vmem:[%s5] sm:$0xff]
    %v734 = vld [vmem:[%s5 + $0x8] sm:$0x3]
    %vm735 = vcmask 80896
    %v737 = vsel %vm735, %v732, 0
    %vm739 = vcmask 1041408
    %v741 = vsel %vm739, %v734, 0
    %743 = vmatpush.msra.mxu0 0.0
    %744 = vmatpush.msra.mxu0 0.0
    %745 = vmatpush.msra.mxu0 0.0
    %746 = vmatpush.msra.mxu0 0.0
    %747 = vmatpush.msra.mxu0 0.0
    %748 = vmatpush.msra.mxu0 0.0
    %749 = vmatpush.msra.mxu0 0.0
    %750 = vmatpush.msra.mxu0 0.0
    %751 = vmatpush.msra.mxu0 0.0
    %752 = vmatpush.msra.mxu0 0.0
    %753 = vmatpush.msra.mxu0 0.0
    %754 = vmatpush.msra.mxu0 0.0
    %755 = vmatpush.msra.mxu0 0.0
    %756 = vmatpush.msra.mxu0 0.0
    %757 = vmatpush.msra.mxu0 %v741
    %758 = vmatpush.msra.mxu0 %v733
    %759 = vmatmul.f32.gmra.mxu0 %v737
    %v760 = vpop.f32.mrf.mxu0
    %v761 = vadd.f32 0.0, %v760
    %762 = vdwg.mxu0
    %v763 = vadd.f32 %v725, %v761
    %v764 = vmax.f32 %v763, 0.0
    %v765 = vld [vmem:[%s10] sm:$0xff]
    %v766 = vld [vmem:[%s10 + $0x8] sm:$0xff]
    %v767 = vld [vmem:[%s10 + $0x10] sm:$0xff]
    %v768 = vld [vmem:[%s10 + $0x18] sm:$0xff]
    %v769 = vld [vmem:[%s11] sm:$0x1]
    %v771 = vperm.slane %v769, 0
    %v774 = vsel %vm243, %v764, 0
    %776 = vmatpush.msra.mxu0 0.0
    %777 = vmatpush.msra.mxu0 0.0
    %778 = vmatpush.msra.mxu0 0.0
    %779 = vmatpush.msra.mxu0 0.0
    %780 = vmatpush.msra.mxu0 0.0
    %781 = vmatpush.msra.mxu0 0.0
    %782 = vmatpush.msra.mxu0 0.0
    %783 = vmatpush.msra.mxu0 0.0
    %784 = vmatpush.msra.mxu0 0.0
    %785 = vmatpush.msra.mxu0 0.0
    %786 = vmatpush.msra.mxu0 0.0
    %787 = vmatpush.msra.mxu0 0.0
    %788 = vmatpush.msra.mxu0 %v768
    %789 = vmatpush.msra.mxu0 %v767
    %790 = vmatpush.msra.mxu0 %v766
    %791 = vmatpush.msra.mxu0 %v765
    %792 = vmatmul.f32.gmra.mxu0 %v774
    %v793 = vpop.f32.mrf.mxu0
    %v794 = vadd.f32 %v771, %v793
    %795 = vdwg.mxu0
    %vm796 = vcmask 19456
    %797 = vst.msk [vmem:[#allocation2] sm:$0xf] %vm796, %v794
    // Predicated region
    $region50: #{bigru_aspect_forward.1} parent=1 // pred_check
      _
    $region51: #{bigru_aspect_forward.1} parent=1 // pred_check_branch
      %799 = sbr.rel (0) target = $region53
    $region52: #{bigru_aspect_forward.1} parent=1 // pred_region
      %801 = vsyncadd [#allocation3], 0
      %s803 = sshll.u32 [#allocation2], 4
      %s804 = int_to_ptr.vmem [resolvable:$true] %s803
      %s805 = sshll.u32 %s12, 4
      %s806 = int_to_ptr.hbm [resolvable:$true] %s805
      %808 = dma.vmem_to_hbm [thread:$0]  %s804, 64, %s806, [#allocation3]
    $region53: #{bigru_aspect_forward.1} parent=1 // pred_fallthru
      _
    // Predicated region
    $region54: #{bigru_aspect_forward.1} parent=1 // pred_check
      _
    $region55: #{bigru_aspect_forward.1} parent=1 // pred_check_branch
      %810 = sbr.rel (0) target = $region57
    $region56: #{bigru_aspect_forward.1} parent=1 // pred_region
      %812 = dma.done [#allocation3], 64
    $region57: #{bigru_aspect_forward.1} parent=1 // pred_fallthru
      _
    %813 = vsyncpa [#allocation3], 1

</llo_original>
